<compile_context>
chip_gen: v6e
topology: v6e:2x2x1
jax: 0.10.0
libtpu: 0.0.40
codegen_flags: <defaults>
</compile_context>

<pallas_src>
import functools

import jax
import jax.numpy as jnp
from jax.experimental import pallas as pl
from jax.experimental.pallas import tpu as pltpu


def _round_up(x, m):
    return (x + m - 1) // m * m


# ----------------------------------------------------------------------------
# Pallas kernel: fused 3-layer MLP on one batch tile.
#   h1 = relu(x @ W1 + b1); h2 = relu(h1 @ W2 + b2); y = h2 @ W3 + b3
# x arrives as f32 (real 56-channel payload) and is cast to bf16 in-kernel;
# weights are bf16, accumulation and bias/ReLU are f32.  The output is stored
# compact (TB, 24) f32 — no padded lanes, no post-kernel slice.
# ----------------------------------------------------------------------------
def _mlp_kernel(x_ref, w1_ref, b1_ref, w2_ref, b2_ref, w3_ref, b3_ref, o_ref):
    x = x_ref[...].astype(jnp.bfloat16)                                # (TB, 56)
    h1 = jnp.dot(x, w1_ref[...], preferred_element_type=jnp.float32)  # (TB, H) f32
    h1 = jnp.maximum(h1 + b1_ref[...], 0.0)
    h2 = jnp.dot(h1.astype(jnp.bfloat16), w2_ref[...],
                 preferred_element_type=jnp.float32)
    h2 = jnp.maximum(h2 + b2_ref[...], 0.0)
    y = jnp.dot(h2.astype(jnp.bfloat16), w3_ref[...],
                preferred_element_type=jnp.float32)                   # (TB, 24)
    o_ref[...] = y + b3_ref[...]


def baseline_mlp_pallas(x, params, *, tb=1024):
    """x: (B, d_in) f32 (un-padded) -> (B, d_out) f32 via the fused MLP kernel."""
    w1, b1, w2, b2, w3, b3 = params
    B, d_in = x.shape
    d_out = w3.shape[1]

    # Batch tile selection:
    #  * never larger than the (8-rounded) batch,
    #  * for large batches, cap TB so the grid has >=4 steps -> each TC keeps
    #    >=2 pipelined steps under megacore sharding (matters most on v7x).
    b_ceil8 = _round_up(B, 8)
    tb = min(tb, b_ceil8)
    min_steps = 4
    if b_ceil8 >= min_steps * 128:
        tb = min(tb, _round_up(pl.cdiv(B, min_steps), 8))

    b_pad = _round_up(B, tb)
    if b_pad != B:
        x = jnp.pad(x, ((0, b_pad - B), (0, 0)))

    const_spec = lambda shape: pl.BlockSpec(shape, lambda i: (0, 0))

    out = pl.pallas_call(
        _mlp_kernel,
        out_shape=jax.ShapeDtypeStruct((b_pad, d_out), jnp.float32),
        grid=(b_pad // tb,),
        in_specs=[
            pl.BlockSpec((tb, d_in), lambda i: (i, 0)),   # x: tiled over batch
            const_spec(w1.shape),                         # weights/biases: VMEM-resident
            const_spec(b1.shape),
            const_spec(w2.shape),
            const_spec(b2.shape),
            const_spec(w3.shape),
            const_spec(b3.shape),
        ],
        out_specs=pl.BlockSpec((tb, d_out), lambda i: (i, 0)),
        compiler_params=pltpu.CompilerParams(
            dimension_semantics=("parallel",),            # shard batch tiles across TCs
        ),
    )(x, w1, b1, w2, b2, w3, b3)

    return out[:B] if b_pad != B else out


# ----------------------------------------------------------------------------
# Parameter handling.
# ----------------------------------------------------------------------------
def init_params(key, num_objects, hidden=128):
    """Raw f32 parameters of the 3-layer baseline MLP (true, un-padded sizes)."""
    d_in = num_objects * 7
    d_out = num_objects * 3
    k1, k2, k3 = jax.random.split(key, 3)
    scale1 = 1.0 / jnp.sqrt(d_in)
    scale2 = 1.0 / jnp.sqrt(hidden)
    w1 = jax.random.normal(k1, (d_in, hidden), jnp.float32) * scale1
    b1 = jnp.zeros((1, hidden), jnp.float32)
    w2 = jax.random.normal(k2, (hidden, hidden), jnp.float32) * scale2
    b2 = jnp.zeros((1, hidden), jnp.float32)
    w3 = jax.random.normal(k3, (hidden, d_out), jnp.float32) * scale2
    b3 = jnp.zeros((1, d_out), jnp.float32)
    return (w1, b1, w2, b2, w3, b3)


def prepare_params(params):
    """Cast weights to bf16 for the MXU fast path; biases stay f32. No padding needed:
    every weight/bias block is the full array, so arbitrary feature dims are legal."""
    w1, b1, w2, b2, w3, b3 = params
    return (
        w1.astype(jnp.bfloat16), b1.astype(jnp.float32),
        w2.astype(jnp.bfloat16), b2.astype(jnp.float32),
        w3.astype(jnp.bfloat16), b3.astype(jnp.float32),
    )


# ----------------------------------------------------------------------------
# Wrapper reproducing NBodyBaselineWrapper.forward semantics:
#   returns (net(inputs), zeros(batchsize))
# ----------------------------------------------------------------------------
@functools.partial(jax.jit, static_argnames=("tb",))
def nbody_baseline_wrapper_forward(inputs, params_prepared, *, tb=1024):
    """inputs: (batch, objects, 7) f32 -> ((batch, objects, 3) f32, (batch,) zeros)."""
    batchsize, num_objects, in_ch = inputs.shape
    d_in = num_objects * in_ch
    x_flat = inputs.reshape(batchsize, d_in).astype(jnp.float32)   # free bitcast reshape
    y = baseline_mlp_pallas(x_flat, params_prepared, tb=tb)        # (batch, d_out) f32
    outputs = y.reshape(batchsize, num_objects, 3)
    other = jnp.zeros((batchsize,), dtype=inputs.dtype)            # dummy term, as in PyTorch
    return outputs, other


def _reference_forward(inputs, raw_params):
    """Pure-JAX f32 reference for correctness checking."""
    w1, b1, w2, b2, w3, b3 = raw_params
    B, N, C = inputs.shape
    x = inputs.reshape(B, N * C)
    h = jnp.maximum(x @ w1 + b1, 0.0)
    h = jnp.maximum(h @ w2 + b2, 0.0)
    y = h @ w3 + b3
    return y.reshape(B, N, 3), jnp.zeros((B,), inputs.dtype)


if __name__ == "__main__":
    key = jax.random.PRNGKey(0)
    k_in, k_par, k_big = jax.random.split(key, 3)

    num_objects = 8
    raw_params = init_params(k_par, num_objects, hidden=128)
    params = prepare_params(raw_params)

    # --- small case, matching the module's tiny-batch usage -----------------
    batch = 2
    inputs = jax.random.normal(k_in, (batch, num_objects, 7), jnp.float32)
    outputs, other = nbody_baseline_wrapper_forward(inputs, params)
    outputs = jax.block_until_ready(outputs)
    other = jax.block_until_ready(other)

    ref_out, _ = _reference_forward(inputs, raw_params)
    assert outputs.shape == (batch, num_objects, 3)
    assert other.shape == (batch,)
    assert jnp.allclose(outputs, ref_out, atol=5e-2, rtol=5e-2), float(
        jnp.max(jnp.abs(outputs - ref_out))
    )
    assert jnp.all(other == 0)

    # --- multi-tile case: exercises the batch grid / megacore pipelining ----
    big_batch = 1024
    big_inputs = jax.random.normal(k_big, (big_batch, num_objects, 7), jnp.float32)
    big_out, big_other = nbody_baseline_wrapper_forward(big_inputs, params)
    big_out = jax.block_until_ready(big_out)
    ref_big, _ = _reference_forward(big_inputs, raw_params)
    assert big_out.shape == (big_batch, num_objects, 3)
    assert big_other.shape == (big_batch,)
    assert jnp.allclose(big_out, ref_big, atol=5e-2, rtol=5e-2), float(
        jnp.max(jnp.abs(big_out - ref_big))
    )

    print("KERNEL_OK")
</pallas_src>

<mosaic_0001>
module attributes {stable_mosaic.version = 11 : i64} {
  func.func @_mlp_kernel(%arg0: i32, %arg1: memref<8x56xf32, #tpu.memory_space<vmem>>, %arg2: memref<56x128xbf16, #tpu.memory_space<vmem>>, %arg3: memref<1x128xf32, #tpu.memory_space<vmem>>, %arg4: memref<128x128xbf16, #tpu.memory_space<vmem>>, %arg5: memref<1x128xf32, #tpu.memory_space<vmem>>, %arg6: memref<128x24xbf16, #tpu.memory_space<vmem>>, %arg7: memref<1x24xf32, #tpu.memory_space<vmem>>, %arg8: memref<8x24xf32, #tpu.memory_space<vmem>>) attributes {dimension_semantics = [#tpu.dimension_semantics<parallel>], iteration_bounds = array<i64: 1>, scalar_prefetch = 0 : i64, scratch_operands = 0 : i64, tpu.core_type = #tpu.core_type<tc>, window_params = [{transform_indices = @transform_0, window_bounds = array<i64: 8, 56>}, {pipeline_mode = #tpu.pipeline_mode<synchronous>, transform_indices = @transform_1, window_bounds = array<i64: 56, 128>}, {pipeline_mode = #tpu.pipeline_mode<synchronous>, transform_indices = @transform_2, window_bounds = array<i64: 1, 128>}, {pipeline_mode = #tpu.pipeline_mode<synchronous>, transform_indices = @transform_3, window_bounds = array<i64: 128, 128>}, {pipeline_mode = #tpu.pipeline_mode<synchronous>, transform_indices = @transform_4, window_bounds = array<i64: 1, 128>}, {pipeline_mode = #tpu.pipeline_mode<synchronous>, transform_indices = @transform_5, window_bounds = array<i64: 128, 24>}, {pipeline_mode = #tpu.pipeline_mode<synchronous>, transform_indices = @transform_6, window_bounds = array<i64: 1, 24>}, {transform_indices = @transform_7, window_bounds = array<i64: 8, 24>}]} {
    %c0 = arith.constant 0 : index
    %c0_0 = arith.constant 0 : index
    %0 = vector.load %arg1[%c0, %c0_0] : memref<8x56xf32, #tpu.memory_space<vmem>>, vector<8x56xf32>
    %1 = arith.truncf %0 : vector<8x56xf32> to vector<8x56xbf16>
    %c0_1 = arith.constant 0 : index
    %c0_2 = arith.constant 0 : index
    %2 = vector.load %arg2[%c0_1, %c0_2] : memref<56x128xbf16, #tpu.memory_space<vmem>>, vector<56x128xbf16>
    %cst = arith.constant dense<0.000000e+00> : vector<8x128xf32>
    %3 = tpu.matmul %1, %2, %cst {dimension_numbers = #tpu.dot_dimension_numbers<[1], [0], [0], [1], [0, 0, 1, 1], [], []>} : vector<8x56xbf16>, vector<56x128xbf16>, vector<8x128xf32> -> vector<8x128xf32>
    %c0_3 = arith.constant 0 : index
    %c0_4 = arith.constant 0 : index
    %4 = vector.load %arg3[%c0_3, %c0_4] : memref<1x128xf32, #tpu.memory_space<vmem>>, vector<1x128xf32>
    %5 = vector.broadcast %4 : vector<1x128xf32> to vector<8x128xf32>
    %6 = arith.addf %3, %5 : vector<8x128xf32>
    %cst_5 = arith.constant 0.000000e+00 : f32
    %7 = vector.broadcast %cst_5 : f32 to vector<8x128xf32>
    %8 = arith.maximumf %6, %7 : vector<8x128xf32>
    %9 = arith.truncf %8 : vector<8x128xf32> to vector<8x128xbf16>
    %c0_6 = arith.constant 0 : index
    %c0_7 = arith.constant 0 : index
    %10 = vector.load %arg4[%c0_6, %c0_7] : memref<128x128xbf16, #tpu.memory_space<vmem>>, vector<128x128xbf16>
    %cst_8 = arith.constant dense<0.000000e+00> : vector<8x128xf32>
    %11 = tpu.matmul %9, %10, %cst_8 {dimension_numbers = #tpu.dot_dimension_numbers<[1], [0], [0], [1], [0, 0, 1, 1], [], []>} : vector<8x128xbf16>, vector<128x128xbf16>, vector<8x128xf32> -> vector<8x128xf32>
    %c0_9 = arith.constant 0 : index
    %c0_10 = arith.constant 0 : index
    %12 = vector.load %arg5[%c0_9, %c0_10] : memref<1x128xf32, #tpu.memory_space<vmem>>, vector<1x128xf32>
    %13 = vector.broadcast %12 : vector<1x128xf32> to vector<8x128xf32>
    %14 = arith.addf %11, %13 : vector<8x128xf32>
    %cst_11 = arith.constant 0.000000e+00 : f32
    %15 = vector.broadcast %cst_11 : f32 to vector<8x128xf32>
    %16 = arith.maximumf %14, %15 : vector<8x128xf32>
    %17 = arith.truncf %16 : vector<8x128xf32> to vector<8x128xbf16>
    %c0_12 = arith.constant 0 : index
    %c0_13 = arith.constant 0 : index
    %18 = vector.load %arg6[%c0_12, %c0_13] : memref<128x24xbf16, #tpu.memory_space<vmem>>, vector<128x24xbf16>
    %cst_14 = arith.constant dense<0.000000e+00> : vector<8x24xf32>
    %19 = tpu.matmul %17, %18, %cst_14 {dimension_numbers = #tpu.dot_dimension_numbers<[1], [0], [0], [1], [0, 0, 1, 1], [], []>} : vector<8x128xbf16>, vector<128x24xbf16>, vector<8x24xf32> -> vector<8x24xf32>
    %c0_15 = arith.constant 0 : index
    %c0_16 = arith.constant 0 : index
    %20 = vector.load %arg7[%c0_15, %c0_16] : memref<1x24xf32, #tpu.memory_space<vmem>>, vector<1x24xf32>
    %21 = vector.broadcast %20 : vector<1x24xf32> to vector<8x24xf32>
    %22 = arith.addf %19, %21 : vector<8x24xf32>
    %c0_17 = arith.constant 0 : index
    %c0_18 = arith.constant 0 : index
    %23 = vector.load %arg8[%c0_17, %c0_18] : memref<8x24xf32, #tpu.memory_space<vmem>>, vector<8x24xf32>
    tpu.vector_store %arg8[%c0_17, %c0_18], %22 {strides = array<i32>} : memref<8x24xf32, #tpu.memory_space<vmem>>, vector<8x24xf32>,
    return
  }
  func.func @transform_0(%arg0: i32) -> (i32, i32) {
    %c0_i32 = arith.constant 0 : i32
    %c0_i32_0 = arith.constant 0 : i32
    return %arg0, %c0_i32 : i32, i32
  }
  func.func @transform_1(%arg0: i32) -> (i32, i32) {
    %c0_i32 = arith.constant 0 : i32
    %c0_i32_0 = arith.constant 0 : i32
    %c0_i32_1 = arith.constant 0 : i32
    return %c0_i32, %c0_i32_0 : i32, i32
  }
  func.func @transform_2(%arg0: i32) -> (i32, i32) {
    %c0_i32 = arith.constant 0 : i32
    %c0_i32_0 = arith.constant 0 : i32
    %c0_i32_1 = arith.constant 0 : i32
    return %c0_i32, %c0_i32_0 : i32, i32
  }
  func.func @transform_3(%arg0: i32) -> (i32, i32) {
    %c0_i32 = arith.constant 0 : i32
    %c0_i32_0 = arith.constant 0 : i32
    %c0_i32_1 = arith.constant 0 : i32
    return %c0_i32, %c0_i32_0 : i32, i32
  }
  func.func @transform_4(%arg0: i32) -> (i32, i32) {
    %c0_i32 = arith.constant 0 : i32
    %c0_i32_0 = arith.constant 0 : i32
    %c0_i32_1 = arith.constant 0 : i32
    return %c0_i32, %c0_i32_0 : i32, i32
  }
  func.func @transform_5(%arg0: i32) -> (i32, i32) {
    %c0_i32 = arith.constant 0 : i32
    %c0_i32_0 = arith.constant 0 : i32
    %c0_i32_1 = arith.constant 0 : i32
    return %c0_i32, %c0_i32_0 : i32, i32
  }
  func.func @transform_6(%arg0: i32) -> (i32, i32) {
    %c0_i32 = arith.constant 0 : i32
    %c0_i32_0 = arith.constant 0 : i32
    %c0_i32_1 = arith.constant 0 : i32
    return %c0_i32, %c0_i32_0 : i32, i32
  }
  func.func @transform_7(%arg0: i32) -> (i32, i32) {
    %c0_i32 = arith.constant 0 : i32
    %c0_i32_0 = arith.constant 0 : i32
    return %arg0, %c0_i32 : i32, i32
  }
}

</mosaic_0001>

<llo_original>
// kernel: nbody_baseline_wrapper_forward.1
$region0: #{nbody_baseline_wrapper_forward.1}
  #allocation0 [shape = 'u32[]', space=smem, size = 0x4, offset = 0x4, fixed_abs, tag = 'smem constant byte address 0x4 - core index']
  #allocation1 [shape = 'u32[144,128]{1,0:T(1,128)}', space=vmem, size = 0x12000, scoped, tag = 'internal scratch']
  %s0 = inlined_call_operand.vmem [shape: f32[8,56], index: 0, kind: input, shape index: {}]
  %s1 = inlined_call_operand.vmem [shape: bf16[56,128], index: 1, kind: input, shape index: {}]
  %s2 = inlined_call_operand.vmem [shape: f32[1,128], index: 2, kind: input, shape index: {}]
  %s3 = inlined_call_operand.vmem [shape: bf16[128,128], index: 3, kind: input, shape index: {}]
  %s4 = inlined_call_operand.vmem [shape: f32[1,128], index: 4, kind: input, shape index: {}]
  %s5 = inlined_call_operand.vmem [shape: bf16[128,24], index: 5, kind: input, shape index: {}]
  %s6 = inlined_call_operand.vmem [shape: f32[1,24], index: 6, kind: input, shape index: {}]
  %s7 = inlined_call_operand.vmem [shape: f32[8,24], index: 7, kind: output, shape index: {}]
  %s8 = sld [smem:[#allocation0]]
  $region38: #{nbody_baseline_wrapper_forward.1} parent=0
    _
  %s10 = ssub.s32 1, %s8
  %s11 = scalar_select 0, %s10, %s8
  // Predicated region
  $region2: #{nbody_baseline_wrapper_forward.1} parent=0 // pred_check
    _
  $region3: #{nbody_baseline_wrapper_forward.1} parent=0 // pred_check_branch
    %13 = sbr.rel (0) target = $region5
  $region4: #{nbody_baseline_wrapper_forward.1} parent=0 // pred_region
    _
  $region5: #{nbody_baseline_wrapper_forward.1} parent=0 // pred_fallthru
    _
  // Predicated region
  $region6: #{nbody_baseline_wrapper_forward.1} parent=0 // pred_check
    _
  $region7: #{nbody_baseline_wrapper_forward.1} parent=0 // pred_check_branch
    %15 = sbr.rel (0) target = $region9
  $region8: #{nbody_baseline_wrapper_forward.1} parent=0 // pred_region
    _
  $region9: #{nbody_baseline_wrapper_forward.1} parent=0 // pred_fallthru
    _
  // Predicated region
  $region10: #{nbody_baseline_wrapper_forward.1} parent=0 // pred_check
    _
  $region11: #{nbody_baseline_wrapper_forward.1} parent=0 // pred_check_branch
    %17 = sbr.rel (0) target = $region13
  $region12: #{nbody_baseline_wrapper_forward.1} parent=0 // pred_region
    _
  $region13: #{nbody_baseline_wrapper_forward.1} parent=0 // pred_fallthru
    _
  // Predicated region
  $region14: #{nbody_baseline_wrapper_forward.1} parent=0 // pred_check
    _
  $region15: #{nbody_baseline_wrapper_forward.1} parent=0 // pred_check_branch
    %19 = sbr.rel (0) target = $region17
  $region16: #{nbody_baseline_wrapper_forward.1} parent=0 // pred_region
    _
  $region17: #{nbody_baseline_wrapper_forward.1} parent=0 // pred_fallthru
    _
  // Predicated region
  $region18: #{nbody_baseline_wrapper_forward.1} parent=0 // pred_check
    _
  $region19: #{nbody_baseline_wrapper_forward.1} parent=0 // pred_check_branch
    %21 = sbr.rel (0) target = $region21
  $region20: #{nbody_baseline_wrapper_forward.1} parent=0 // pred_region
    _
  $region21: #{nbody_baseline_wrapper_forward.1} parent=0 // pred_fallthru
    _
  // Predicated region
  $region22: #{nbody_baseline_wrapper_forward.1} parent=0 // pred_check
    _
  $region23: #{nbody_baseline_wrapper_forward.1} parent=0 // pred_check_branch
    %23 = sbr.rel (0) target = $region25
  $region24: #{nbody_baseline_wrapper_forward.1} parent=0 // pred_region
    _
  $region25: #{nbody_baseline_wrapper_forward.1} parent=0 // pred_fallthru
    _
  // Predicated region
  $region26: #{nbody_baseline_wrapper_forward.1} parent=0 // pred_check
    _
  $region27: #{nbody_baseline_wrapper_forward.1} parent=0 // pred_check_branch
    %25 = sbr.rel (0) target = $region29
  $region28: #{nbody_baseline_wrapper_forward.1} parent=0 // pred_region
    _
  $region29: #{nbody_baseline_wrapper_forward.1} parent=0 // pred_fallthru
    _
  %v27 = vld [vmem:[%s0] sm:$0xff]
  %v28 = vpack.c.bf16 %v27, %v27
  %v29 = vld [vmem:[%s1] sm:$0xf]
  %v30 = vld [vmem:[%s1 + $0x4] sm:$0xf]
  %v31 = vld [vmem:[%s1 + $0x8] sm:$0xf]
  %v32 = vld [vmem:[%s1 + $0xc] sm:$0xf]
  %v33 = vld [vmem:[%s1 + $0x10] sm:$0xf]
  %v34 = vld [vmem:[%s1 + $0x14] sm:$0xf]
  %v35 = vld [vmem:[%s1 + $0x18] sm:$0xf]
  %v36 = vld [vmem:[%s2] sm:$0x1]
  %v38 = vlaneseq
  %v39 = vshrl.u32 %v38, 7
  %v40 = vsub.s32 0, %v39
  %v41 = vrot.slane %v36, %v40
  %v50 = vunpack.c.l.b16 %v29
  %v51 = vunpack.c.l.b16 %v30
  %v52 = vunpack.c.l.b16 %v31
  %v53 = vunpack.c.l.b16 %v32
  %v54 = vunpack.c.l.b16 %v33
  %v55 = vunpack.c.l.b16 %v34
  %v56 = vunpack.c.l.b16 %v35
  %v57 = vpack.c.b16 %v51, %v50
  %v58 = vpack.c.b16 %v53, %v52
  %v59 = vpack.c.b16 %v55, %v54
  %v60 = vpack.c.b16 %v56, %v56
  %vm64 = vcmask 457728
  %v66 = vsel %vm64, %v28, 0
  %vm68 = vcmask 1043456
  %v70 = vsel %vm68, %v60, 0
  %72 = vmatprep.subr.bf16.mxu0 0
  %73 = vmatpush1.bf16.msra.mxu0 0
  %74 = vmatprep.subr.bf16.mxu0 0
  %75 = vmatpush1.bf16.msra.mxu0 0
  %76 = vmatprep.subr.bf16.mxu0 0
  %77 = vmatpush1.bf16.msra.mxu0 0
  %78 = vmatprep.subr.bf16.mxu0 0
  %79 = vmatpush1.bf16.msra.mxu0 0
  %80 = vmatprep.subr.bf16.mxu0 0
  %81 = vmatpush1.bf16.msra.mxu0 %v70
  %82 = vmatprep.subr.bf16.mxu0 0
  %83 = vmatpush1.bf16.msra.mxu0 %v59
  %84 = vmatprep.subr.bf16.mxu0 0
  %85 = vmatpush1.bf16.msra.mxu0 %v58
  %86 = vmatprep.subr.bf16.mxu0 0
  %87 = vmatpush1.bf16.msra.mxu0 %v57
  %88 = vmatprep.subr.bf16.mxu0 0
  %89 = vmatpush2.bf16.msra.mxu0 0
  %90 = vmatprep.subr.bf16.mxu0 0
  %91 = vmatpush2.bf16.msra.mxu0 0
  %92 = vmatprep.subr.bf16.mxu0 0
  %93 = vmatpush2.bf16.msra.mxu0 0
  %94 = vmatprep.subr.bf16.mxu0 0
  %95 = vmatpush2.bf16.msra.mxu0 0
  %96 = vmatprep.subr.bf16.mxu0 0
  %97 = vmatpush2.bf16.msra.mxu0 0
  %98 = vmatprep.subr.bf16.mxu0 0
  %99 = vmatpush2.bf16.msra.mxu0 0
  %100 = vmatprep.subr.bf16.mxu0 0
  %101 = vmatpush2.bf16.msra.mxu0 0
  %102 = vmatprep.subr.bf16.mxu0 0
  %103 = vmatpush2.bf16.msra.mxu0 0
  %104 = vmatprep.mubr.bf16.mxu0 0
  %105 = vmatmul.mubr.bf16.gmra.mxu0 %v66
  %v106 = vpop.f32.mrf.mxu0
  %v107 = vadd.f32 %v41, %v106
  %v108 = vpop.f32.mrf.mxu0
  %v109 = vpop.f32.mrf.mxu0
  %v110 = vpop.f32.mrf.mxu0
  %111 = vdwg.mxu0
  %v112 = vmax.f32 %v107, 0.0
  %v113 = vpack.c.bf16 %v112, %v112
  %v114 = vld [vmem:[%s3] sm:$0xf]
  %v115 = vld [vmem:[%s3 + $0x4] sm:$0xf]
  %v116 = vld [vmem:[%s3 + $0x8] sm:$0xf]
  %v117 = vld [vmem:[%s3 + $0xc] sm:$0xf]
  %v118 = vld [vmem:[%s3 + $0x10] sm:$0xf]
  %v119 = vld [vmem:[%s3 + $0x14] sm:$0xf]
  %v120 = vld [vmem:[%s3 + $0x18] sm:$0xf]
  %v121 = vld [vmem:[%s3 + $0x1c] sm:$0xf]
  %v122 = vld [vmem:[%s3 + $0x20] sm:$0xf]
  %v123 = vld [vmem:[%s3 + $0x24] sm:$0xf]
  %v124 = vld [vmem:[%s3 + $0x28] sm:$0xf]
  %v125 = vld [vmem:[%s3 + $0x2c] sm:$0xf]
  %v126 = vld [vmem:[%s3 + $0x30] sm:$0xf]
  %v127 = vld [vmem:[%s3 + $0x34] sm:$0xf]
  %v128 = vld [vmem:[%s3 + $0x38] sm:$0xf]
  %v129 = vld [vmem:[%s3 + $0x3c] sm:$0xf]
  %v130 = vld [vmem:[%s4] sm:$0x1]
  %v132 = vlaneseq
  %v133 = vshrl.u32 %v132, 7
  %v134 = vsub.s32 0, %v133
  %v135 = vrot.slane %v130, %v134
  %v153 = vunpack.c.l.b16 %v114
  %v154 = vunpack.c.l.b16 %v115
  %v155 = vunpack.c.l.b16 %v116
  %v156 = vunpack.c.l.b16 %v117
  %v157 = vunpack.c.l.b16 %v118
  %v158 = vunpack.c.l.b16 %v119
  %v159 = vunpack.c.l.b16 %v120
  %v160 = vunpack.c.l.b16 %v121
  %v161 = vunpack.c.l.b16 %v122
  %v162 = vunpack.c.l.b16 %v123
  %v163 = vunpack.c.l.b16 %v124
  %v164 = vunpack.c.l.b16 %v125
  %v165 = vunpack.c.l.b16 %v126
  %v166 = vunpack.c.l.b16 %v127
  %v167 = vunpack.c.l.b16 %v128
  %v168 = vunpack.c.l.b16 %v129
  %v169 = vpack.c.b16 %v154, %v153
  %v170 = vpack.c.b16 %v156, %v155
  %v171 = vpack.c.b16 %v158, %v157
  %v172 = vpack.c.b16 %v160, %v159
  %v173 = vpack.c.b16 %v162, %v161
  %v174 = vpack.c.b16 %v164, %v163
  %v175 = vpack.c.b16 %v166, %v165
  %v176 = vpack.c.b16 %v168, %v167
  %185 = vmatprep.subr.bf16.mxu0 0
  %186 = vmatpush1.bf16.msra.mxu0 %v176
  %187 = vmatprep.subr.bf16.mxu0 0
  %188 = vmatpush1.bf16.msra.mxu0 %v175
  %189 = vmatprep.subr.bf16.mxu0 0
  %190 = vmatpush1.bf16.msra.mxu0 %v174
  %191 = vmatprep.subr.bf16.mxu0 0
  %192 = vmatpush1.bf16.msra.mxu0 %v173
  %193 = vmatprep.subr.bf16.mxu0 0
  %194 = vmatpush1.bf16.msra.mxu0 %v172
  %195 = vmatprep.subr.bf16.mxu0 0
  %196 = vmatpush1.bf16.msra.mxu0 %v171
  %197 = vmatprep.subr.bf16.mxu0 0
  %198 = vmatpush1.bf16.msra.mxu0 %v170
  %199 = vmatprep.subr.bf16.mxu0 0
  %200 = vmatpush1.bf16.msra.mxu0 %v169
  %201 = vmatprep.subr.bf16.mxu0 0
  %202 = vmatpush2.bf16.msra.mxu0 0
  %203 = vmatprep.subr.bf16.mxu0 0
  %204 = vmatpush2.bf16.msra.mxu0 0
  %205 = vmatprep.subr.bf16.mxu0 0
  %206 = vmatpush2.bf16.msra.mxu0 0
  %207 = vmatprep.subr.bf16.mxu0 0
  %208 = vmatpush2.bf16.msra.mxu0 0
  %209 = vmatprep.subr.bf16.mxu0 0
  %210 = vmatpush2.bf16.msra.mxu0 0
  %211 = vmatprep.subr.bf16.mxu0 0
  %212 = vmatpush2.bf16.msra.mxu0 0
  %213 = vmatprep.subr.bf16.mxu0 0
  %214 = vmatpush2.bf16.msra.mxu0 0
  %215 = vmatprep.subr.bf16.mxu0 0
  %216 = vmatpush2.bf16.msra.mxu0 0
  %217 = vmatprep.mubr.bf16.mxu0 0
  %218 = vmatmul.mubr.bf16.gmra.mxu0 %v113
  %v219 = vpop.f32.mrf.mxu0
  %v220 = vadd.f32 %v135, %v219
  %v221 = vpop.f32.mrf.mxu0
  %v222 = vpop.f32.mrf.mxu0
  %v223 = vpop.f32.mrf.mxu0
  %224 = vdwg.mxu0
  %v225 = vmax.f32 %v220, 0.0
  %v226 = vpack.c.bf16 %v225, %v225
  %v227 = vld [vmem:[%s5] sm:$0xf]
  %v228 = vld [vmem:[%s5 + $0x4] sm:$0xf]
  %v229 = vld [vmem:[%s5 + $0x8] sm:$0xf]
  %v230 = vld [vmem:[%s5 + $0xc] sm:$0xf]
  %v231 = vld [vmem:[%s5 + $0x10] sm:$0xf]
  %v232 = vld [vmem:[%s5 + $0x14] sm:$0xf]
  %v233 = vld [vmem:[%s5 + $0x18] sm:$0xf]
  %v234 = vld [vmem:[%s5 + $0x1c] sm:$0xf]
  %v235 = vld [vmem:[%s5 + $0x20] sm:$0xf]
  %v236 = vld [vmem:[%s5 + $0x24] sm:$0xf]
  %v237 = vld [vmem:[%s5 + $0x28] sm:$0xf]
  %v238 = vld [vmem:[%s5 + $0x2c] sm:$0xf]
  %v239 = vld [vmem:[%s5 + $0x30] sm:$0xf]
  %v240 = vld [vmem:[%s5 + $0x34] sm:$0xf]
  %v241 = vld [vmem:[%s5 + $0x38] sm:$0xf]
  %v242 = vld [vmem:[%s5 + $0x3c] sm:$0xf]
  %v243 = vld [vmem:[%s6] sm:$0x1]
  %v245 = vlaneseq
  %v246 = vshrl.u32 %v245, 7
  %v247 = vsub.s32 0, %v246
  %v248 = vrot.slane %v243, %v247
  %v266 = vunpack.c.l.b16 %v227
  %v267 = vunpack.c.l.b16 %v228
  %v268 = vunpack.c.l.b16 %v229
  %v269 = vunpack.c.l.b16 %v230
  %v270 = vunpack.c.l.b16 %v231
  %v271 = vunpack.c.l.b16 %v232
  %v272 = vunpack.c.l.b16 %v233
  %v273 = vunpack.c.l.b16 %v234
  %v274 = vunpack.c.l.b16 %v235
  %v275 = vunpack.c.l.b16 %v236
  %v276 = vunpack.c.l.b16 %v237
  %v277 = vunpack.c.l.b16 %v238
  %v278 = vunpack.c.l.b16 %v239
  %v279 = vunpack.c.l.b16 %v240
  %v280 = vunpack.c.l.b16 %v241
  %v281 = vunpack.c.l.b16 %v242
  %v282 = vpack.c.b16 %v267, %v266
  %v283 = vpack.c.b16 %v269, %v268
  %v284 = vpack.c.b16 %v271, %v270
  %v285 = vpack.c.b16 %v273, %v272
  %v286 = vpack.c.b16 %v275, %v274
  %v287 = vpack.c.b16 %v277, %v276
  %v288 = vpack.c.b16 %v279, %v278
  %v289 = vpack.c.b16 %v281, %v280
  %298 = vmatprep.subr.bf16.mxu0 0
  %299 = vmatpush1.bf16.msra.mxu0 %v289
  %300 = vmatprep.subr.bf16.mxu0 0
  %301 = vmatpush1.bf16.msra.mxu0 %v288
  %302 = vmatprep.subr.bf16.mxu0 0
  %303 = vmatpush1.bf16.msra.mxu0 %v287
  %304 = vmatprep.subr.bf16.mxu0 0
  %305 = vmatpush1.bf16.msra.mxu0 %v286
  %306 = vmatprep.subr.bf16.mxu0 0
  %307 = vmatpush1.bf16.msra.mxu0 %v285
  %308 = vmatprep.subr.bf16.mxu0 0
  %309 = vmatpush1.bf16.msra.mxu0 %v284
  %310 = vmatprep.subr.bf16.mxu0 0
  %311 = vmatpush1.bf16.msra.mxu0 %v283
  %312 = vmatprep.subr.bf16.mxu0 0
  %313 = vmatpush1.bf16.msra.mxu0 %v282
  %314 = vmatprep.subr.bf16.mxu0 0
  %315 = vmatpush2.bf16.msra.mxu0 0
  %316 = vmatprep.subr.bf16.mxu0 0
  %317 = vmatpush2.bf16.msra.mxu0 0
  %318 = vmatprep.subr.bf16.mxu0 0
  %319 = vmatpush2.bf16.msra.mxu0 0
  %320 = vmatprep.subr.bf16.mxu0 0
  %321 = vmatpush2.bf16.msra.mxu0 0
  %322 = vmatprep.subr.bf16.mxu0 0
  %323 = vmatpush2.bf16.msra.mxu0 0
  %324 = vmatprep.subr.bf16.mxu0 0
  %325 = vmatpush2.bf16.msra.mxu0 0
  %326 = vmatprep.subr.bf16.mxu0 0
  %327 = vmatpush2.bf16.msra.mxu0 0
  %328 = vmatprep.subr.bf16.mxu0 0
  %329 = vmatpush2.bf16.msra.mxu0 0
  %330 = vmatprep.mubr.bf16.mxu0 0
  %331 = vmatmul.mubr.bf16.gmra.mxu0 %v226
  %v332 = vpop.f32.mrf.mxu0
  %v333 = vadd.f32 %v248, %v332
  %v334 = vpop.f32.mrf.mxu0
  %v335 = vpop.f32.mrf.mxu0
  %v336 = vpop.f32.mrf.mxu0
  %337 = vdwg.mxu0
  %vm338 = vcmask 195584
  %339 = vst.msk [vmem:[%s7] sm:$0xff] %vm338, %v333
  // Predicated region
  $region30: #{nbody_baseline_wrapper_forward.1} parent=0 // pred_check
    _
  $region31: #{nbody_baseline_wrapper_forward.1} parent=0 // pred_check_branch
    %341 = sbr.rel (0) target = $region33
  $region32: #{nbody_baseline_wrapper_forward.1} parent=0 // pred_region
    _
  $region33: #{nbody_baseline_wrapper_forward.1} parent=0 // pred_fallthru
    _
  // Predicated region
  $region34: #{nbody_baseline_wrapper_forward.1} parent=0 // pred_check
    _
  $region35: #{nbody_baseline_wrapper_forward.1} parent=0 // pred_check_branch
    %343 = sbr.rel (0) target = $region37
  $region36: #{nbody_baseline_wrapper_forward.1} parent=0 // pred_region
    _
  $region37: #{nbody_baseline_wrapper_forward.1} parent=0 // pred_fallthru
    _

</llo_original>
